<compile_context>
chip_gen: v6e
topology: v6e:2x2x1
jax: 0.10.0
libtpu: 0.0.40
codegen_flags: <defaults>
</compile_context>

<pallas_src>
import jax
import jax.numpy as jnp
from jax.experimental import pallas as pl
from jax.experimental.pallas import tpu as pltpu


D_IN = 360
D_H = 200
D_OUT = 208
N_ABS = 58

D_H_PAD = 256  # hidden width padded to a multiple of 128 lanes


def _round_up(n, m):
    return (n + m - 1) // m * m


def _tanh_dtype_for_device():
    """bf16 tanh on chips with a bf16 EUP (v6e/v7x); f32 on v5e and older."""
    try:
        kind = jax.devices()[0].device_kind.lower()
    except Exception:
        return jnp.bfloat16
    for tag in ("v2", "v3", "v4", "v5"):
        if tag in kind:
            return jnp.float32
    return jnp.bfloat16


def _make_kernel(act_dtype):
    def kernel(x_ref,
               w1_ref, b1_ref,
               w2_ref, b2_ref,
               w3_ref, b3_ref,
               w4_ref, b4_ref,
               w5_ref, b5_ref,
               o_ref):
        # 5 MXU matmuls (bf16 inputs, f32 accumulation).  Biases are (1, fout)
        # rows; the implicit broadcast in the add is cheap (no explicit
        # broadcast_to, which JAX would not CSE).
        h = jnp.dot(x_ref[...], w1_ref[...],
                    preferred_element_type=jnp.float32) + b1_ref[...]
        h = jnp.tanh(h.astype(act_dtype))
        for w_ref, b_ref in ((w2_ref, b2_ref), (w3_ref, b3_ref), (w4_ref, b4_ref)):
            h = jnp.dot(h.astype(jnp.bfloat16), w_ref[...],
                        preferred_element_type=jnp.float32) + b_ref[...]
            h = jnp.tanh(h.astype(act_dtype))
        h = jnp.dot(h.astype(jnp.bfloat16), w5_ref[...],
                    preferred_element_type=jnp.float32) + b5_ref[...]
        # abs on the first 58 output columns, identity on the rest
        # (== torch.cat([abs(h[:, :58]), h[:, 58:]], 1)).  Mask is a single
        # (1, 208) row broadcast over the tile.
        col = jax.lax.broadcasted_iota(jnp.int32, (1, D_OUT), 1)
        o_ref[...] = jnp.where(col < N_ABS, jnp.abs(h), h)
    return kernel


def pack_params(params):
    """Zero-pad hidden widths to 256 lanes and cast weights to bf16.

    params: (w1, b1, ..., w5, b5) with w_i [fan_in, fan_out] f32,
            b_i [1, fan_out] f32.
    Padded hidden columns stay exactly zero through the network: zero weight
    column + zero bias -> tanh(0) = 0, and the corresponding (zero) weight
    rows of the next layer contribute nothing.  The final layer keeps its
    natural 208 columns.
    """
    dims_pad = [(D_IN, D_H_PAD), (D_H_PAD, D_H_PAD), (D_H_PAD, D_H_PAD),
                (D_H_PAD, D_H_PAD), (D_H_PAD, D_OUT)]
    packed = []
    for (w, b), (fi_p, fo_p) in zip(zip(params[0::2], params[1::2]), dims_pad):
        fi, fo = w.shape
        w_p = jnp.zeros((fi_p, fo_p), jnp.float32).at[:fi, :fo].set(w)
        b_p = jnp.zeros((1, fo_p), jnp.float32).at[:, :fo].set(b)
        packed += [w_p.astype(jnp.bfloat16), b_p]
    return tuple(packed)


def net_h_forward(x, packed_params, *, batch_tile=2048, act_dtype=None):
    """x: [B, 360] (f32 or bf16).  packed_params: output of pack_params()."""
    if act_dtype is None:
        act_dtype = _tanh_dtype_for_device()
    B = x.shape[0]
    # bf16 input halves HBM read traffic; under jit this cast fuses with the
    # producer of x (no standalone pre-pass).  Matmul accumulation stays f32.
    x = x.astype(jnp.bfloat16)

    # Tile selection: cap at batch_tile, but never make a single block larger
    # than half the (8-aligned) batch, so large batches always yield >= 2
    # parallel grid steps (both v7x TensorCores get work).
    b8 = _round_up(B, 8)
    tb = max(8, _round_up(min(batch_tile, pl.cdiv(b8, 2)), 8))
    grid = (pl.cdiv(B, tb),)  # last block may be partial; OOB rows are dropped

    def resident(shape):
        nd = len(shape)
        return pl.BlockSpec(shape, lambda i, _nd=nd: (0,) * _nd)  # VMEM-resident

    in_specs = [pl.BlockSpec((tb, D_IN), lambda i: (i, 0))]
    for arr in packed_params:
        in_specs.append(resident(arr.shape))

    out_spec = pl.BlockSpec((tb, D_OUT), lambda i: (i, 0))

    return pl.pallas_call(
        _make_kernel(act_dtype),
        out_shape=jax.ShapeDtypeStruct((B, D_OUT), jnp.float32),
        grid=grid,
        in_specs=in_specs,
        out_specs=out_spec,
        compiler_params=pltpu.CompilerParams(
            dimension_semantics=("parallel",),
            vmem_limit_bytes=48 * 1024 * 1024),
    )(x, *packed_params)


def init_params(key):
    """Deterministic init mimicking nn.Linear's U(-1/sqrt(fan_in), 1/sqrt(fan_in))."""
    dims = [(D_IN, D_H), (D_H, D_H), (D_H, D_H), (D_H, D_H), (D_H, D_OUT)]
    params = []
    for (fin, fout) in dims:
        key, kw, kb = jax.random.split(key, 3)
        bound = 1.0 / jnp.sqrt(jnp.float32(fin))
        w = jax.random.uniform(kw, (fin, fout), jnp.float32, -bound, bound)
        b = jax.random.uniform(kb, (1, fout), jnp.float32, -bound, bound)
        params += [w, b]
    return tuple(params)


def net_h_reference(x, params):
    h = x
    w_list = params[0::2]
    b_list = params[1::2]
    for li in range(4):
        h = jnp.tanh(h @ w_list[li] + b_list[li])
    h = h @ w_list[4] + b_list[4]
    return jnp.concatenate([jnp.abs(h[:, :N_ABS]), h[:, N_ABS:]], axis=1)


if __name__ == "__main__":
    key = jax.random.PRNGKey(0)
    key, kx, kr = jax.random.split(key, 3)
    params = init_params(key)
    packed = pack_params(params)

    # Small demo batch.
    B = 8
    x = jax.random.normal(kx, (B, D_IN), jnp.float32)
    out = jax.block_until_ready(net_h_forward(x, packed))
    ref = net_h_reference(x, params)
    assert out.shape == (B, D_OUT)
    # bf16 matmul inputs / activations (f32 accumulation) -> relaxed tolerance.
    assert jnp.allclose(out, ref, atol=5e-2, rtol=5e-2), "mismatch vs reference (B=8)"

    # Ragged batch: exercises the partial final grid block (no wrapper pad/slice).
    Br = 20
    xr = jax.random.normal(kr, (Br, D_IN), jnp.float32)
    out_r = jax.block_until_ready(net_h_forward(xr, packed))
    ref_r = net_h_reference(xr, params)
    assert out_r.shape == (Br, D_OUT)
    assert jnp.allclose(out_r, ref_r, atol=5e-2, rtol=5e-2), "mismatch vs reference (ragged B)"

    print("KERNEL_OK")
</pallas_src>

<mosaic_0001>
module attributes {stable_mosaic.version = 11 : i64} {
  func.func @kernel(%arg0: i32, %arg1: memref<8x360xbf16, #tpu.memory_space<vmem>>, %arg2: memref<360x256xbf16, #tpu.memory_space<vmem>>, %arg3: memref<1x256xf32, #tpu.memory_space<vmem>>, %arg4: memref<256x256xbf16, #tpu.memory_space<vmem>>, %arg5: memref<1x256xf32, #tpu.memory_space<vmem>>, %arg6: memref<256x256xbf16, #tpu.memory_space<vmem>>, %arg7: memref<1x256xf32, #tpu.memory_space<vmem>>, %arg8: memref<256x256xbf16, #tpu.memory_space<vmem>>, %arg9: memref<1x256xf32, #tpu.memory_space<vmem>>, %arg10: memref<256x208xbf16, #tpu.memory_space<vmem>>, %arg11: memref<1x208xf32, #tpu.memory_space<vmem>>, %arg12: memref<8x208xf32, #tpu.memory_space<vmem>>) attributes {dimension_semantics = [#tpu.dimension_semantics<parallel>], iteration_bounds = array<i64: 1>, scalar_prefetch = 0 : i64, scratch_operands = 0 : i64, tpu.core_type = #tpu.core_type<tc>, window_params = [{transform_indices = @transform_0, window_bounds = array<i64: 8, 360>}, {pipeline_mode = #tpu.pipeline_mode<synchronous>, transform_indices = @transform_1, window_bounds = array<i64: 360, 256>}, {pipeline_mode = #tpu.pipeline_mode<synchronous>, transform_indices = @transform_2, window_bounds = array<i64: 1, 256>}, {pipeline_mode = #tpu.pipeline_mode<synchronous>, transform_indices = @transform_3, window_bounds = array<i64: 256, 256>}, {pipeline_mode = #tpu.pipeline_mode<synchronous>, transform_indices = @transform_4, window_bounds = array<i64: 1, 256>}, {pipeline_mode = #tpu.pipeline_mode<synchronous>, transform_indices = @transform_5, window_bounds = array<i64: 256, 256>}, {pipeline_mode = #tpu.pipeline_mode<synchronous>, transform_indices = @transform_6, window_bounds = array<i64: 1, 256>}, {pipeline_mode = #tpu.pipeline_mode<synchronous>, transform_indices = @transform_7, window_bounds = array<i64: 256, 256>}, {pipeline_mode = #tpu.pipeline_mode<synchronous>, transform_indices = @transform_8, window_bounds = array<i64: 1, 256>}, {pipeline_mode = #tpu.pipeline_mode<synchronous>, transform_indices = @transform_9, window_bounds = array<i64: 256, 208>}, {pipeline_mode = #tpu.pipeline_mode<synchronous>, transform_indices = @transform_10, window_bounds = array<i64: 1, 208>}, {transform_indices = @transform_11, window_bounds = array<i64: 8, 208>}]} {
    %c0 = arith.constant 0 : index
    %c0_0 = arith.constant 0 : index
    %0 = vector.load %arg1[%c0, %c0_0] : memref<8x360xbf16, #tpu.memory_space<vmem>>, vector<8x360xbf16>
    %c0_1 = arith.constant 0 : index
    %c0_2 = arith.constant 0 : index
    %1 = vector.load %arg2[%c0_1, %c0_2] : memref<360x256xbf16, #tpu.memory_space<vmem>>, vector<360x256xbf16>
    %cst = arith.constant dense<0.000000e+00> : vector<8x256xf32>
    %2 = tpu.matmul %0, %1, %cst {dimension_numbers = #tpu.dot_dimension_numbers<[1], [0], [0], [1], [0, 0, 1, 1], [], []>} : vector<8x360xbf16>, vector<360x256xbf16>, vector<8x256xf32> -> vector<8x256xf32>
    %c0_3 = arith.constant 0 : index
    %c0_4 = arith.constant 0 : index
    %3 = vector.load %arg3[%c0_3, %c0_4] : memref<1x256xf32, #tpu.memory_space<vmem>>, vector<1x256xf32>
    %4 = vector.broadcast %3 : vector<1x256xf32> to vector<8x256xf32>
    %5 = arith.addf %2, %4 : vector<8x256xf32>
    %6 = arith.truncf %5 : vector<8x256xf32> to vector<8x256xbf16>
    %7 = math.tanh %6 : vector<8x256xbf16>
    %c0_5 = arith.constant 0 : index
    %c0_6 = arith.constant 0 : index
    %8 = vector.load %arg4[%c0_5, %c0_6] : memref<256x256xbf16, #tpu.memory_space<vmem>>, vector<256x256xbf16>
    %cst_7 = arith.constant dense<0.000000e+00> : vector<8x256xf32>
    %9 = tpu.matmul %7, %8, %cst_7 {dimension_numbers = #tpu.dot_dimension_numbers<[1], [0], [0], [1], [0, 0, 1, 1], [], []>} : vector<8x256xbf16>, vector<256x256xbf16>, vector<8x256xf32> -> vector<8x256xf32>
    %c0_8 = arith.constant 0 : index
    %c0_9 = arith.constant 0 : index
    %10 = vector.load %arg5[%c0_8, %c0_9] : memref<1x256xf32, #tpu.memory_space<vmem>>, vector<1x256xf32>
    %11 = vector.broadcast %10 : vector<1x256xf32> to vector<8x256xf32>
    %12 = arith.addf %9, %11 : vector<8x256xf32>
    %13 = arith.truncf %12 : vector<8x256xf32> to vector<8x256xbf16>
    %14 = math.tanh %13 : vector<8x256xbf16>
    %c0_10 = arith.constant 0 : index
    %c0_11 = arith.constant 0 : index
    %15 = vector.load %arg6[%c0_10, %c0_11] : memref<256x256xbf16, #tpu.memory_space<vmem>>, vector<256x256xbf16>
    %cst_12 = arith.constant dense<0.000000e+00> : vector<8x256xf32>
    %16 = tpu.matmul %14, %15, %cst_12 {dimension_numbers = #tpu.dot_dimension_numbers<[1], [0], [0], [1], [0, 0, 1, 1], [], []>} : vector<8x256xbf16>, vector<256x256xbf16>, vector<8x256xf32> -> vector<8x256xf32>
    %c0_13 = arith.constant 0 : index
    %c0_14 = arith.constant 0 : index
    %17 = vector.load %arg7[%c0_13, %c0_14] : memref<1x256xf32, #tpu.memory_space<vmem>>, vector<1x256xf32>
    %18 = vector.broadcast %17 : vector<1x256xf32> to vector<8x256xf32>
    %19 = arith.addf %16, %18 : vector<8x256xf32>
    %20 = arith.truncf %19 : vector<8x256xf32> to vector<8x256xbf16>
    %21 = math.tanh %20 : vector<8x256xbf16>
    %c0_15 = arith.constant 0 : index
    %c0_16 = arith.constant 0 : index
    %22 = vector.load %arg8[%c0_15, %c0_16] : memref<256x256xbf16, #tpu.memory_space<vmem>>, vector<256x256xbf16>
    %cst_17 = arith.constant dense<0.000000e+00> : vector<8x256xf32>
    %23 = tpu.matmul %21, %22, %cst_17 {dimension_numbers = #tpu.dot_dimension_numbers<[1], [0], [0], [1], [0, 0, 1, 1], [], []>} : vector<8x256xbf16>, vector<256x256xbf16>, vector<8x256xf32> -> vector<8x256xf32>
    %c0_18 = arith.constant 0 : index
    %c0_19 = arith.constant 0 : index
    %24 = vector.load %arg9[%c0_18, %c0_19] : memref<1x256xf32, #tpu.memory_space<vmem>>, vector<1x256xf32>
    %25 = vector.broadcast %24 : vector<1x256xf32> to vector<8x256xf32>
    %26 = arith.addf %23, %25 : vector<8x256xf32>
    %27 = arith.truncf %26 : vector<8x256xf32> to vector<8x256xbf16>
    %28 = math.tanh %27 : vector<8x256xbf16>
    %c0_20 = arith.constant 0 : index
    %c0_21 = arith.constant 0 : index
    %29 = vector.load %arg10[%c0_20, %c0_21] : memref<256x208xbf16, #tpu.memory_space<vmem>>, vector<256x208xbf16>
    %cst_22 = arith.constant dense<0.000000e+00> : vector<8x208xf32>
    %30 = tpu.matmul %28, %29, %cst_22 {dimension_numbers = #tpu.dot_dimension_numbers<[1], [0], [0], [1], [0, 0, 1, 1], [], []>} : vector<8x256xbf16>, vector<256x208xbf16>, vector<8x208xf32> -> vector<8x208xf32>
    %c0_23 = arith.constant 0 : index
    %c0_24 = arith.constant 0 : index
    %31 = vector.load %arg11[%c0_23, %c0_24] : memref<1x208xf32, #tpu.memory_space<vmem>>, vector<1x208xf32>
    %32 = vector.broadcast %31 : vector<1x208xf32> to vector<8x208xf32>
    %33 = arith.addf %30, %32 : vector<8x208xf32>
    %34 = tpu.iota {dimensions = array<i32: 1>} : vector<1x208xi32>
    %c58_i32 = arith.constant 58 : i32
    %35 = vector.broadcast %c58_i32 : i32 to vector<1x208xi32>
    %36 = arith.cmpi slt, %34, %35 : vector<1x208xi32>
    %37 = math.absf %33 : vector<8x208xf32>
    %38 = vector.shape_cast %36 : vector<1x208xi1> to vector<1x208xi1>
    %39 = vector.broadcast %38 : vector<1x208xi1> to vector<8x208xi1>
    %40 = arith.select %39, %37, %33 : vector<8x208xi1>, vector<8x208xf32>
    %c0_25 = arith.constant 0 : index
    %c0_26 = arith.constant 0 : index
    %41 = vector.load %arg12[%c0_25, %c0_26] : memref<8x208xf32, #tpu.memory_space<vmem>>, vector<8x208xf32>
    tpu.vector_store %arg12[%c0_25, %c0_26], %40 {strides = array<i32>} : memref<8x208xf32, #tpu.memory_space<vmem>>, vector<8x208xf32>,
    return
  }
  func.func @transform_0(%arg0: i32) -> (i32, i32) {
    %c0_i32 = arith.constant 0 : i32
    %c0_i32_0 = arith.constant 0 : i32
    return %arg0, %c0_i32 : i32, i32
  }
  func.func @transform_1(%arg0: i32) -> (i32, i32) {
    %c0_i32 = arith.constant 0 : i32
    %c0_i32_0 = arith.constant 0 : i32
    %c0_i32_1 = arith.constant 0 : i32
    return %c0_i32, %c0_i32_0 : i32, i32
  }
  func.func @transform_2(%arg0: i32) -> (i32, i32) {
    %c0_i32 = arith.constant 0 : i32
    %c0_i32_0 = arith.constant 0 : i32
    %c0_i32_1 = arith.constant 0 : i32
    return %c0_i32, %c0_i32_0 : i32, i32
  }
  func.func @transform_3(%arg0: i32) -> (i32, i32) {
    %c0_i32 = arith.constant 0 : i32
    %c0_i32_0 = arith.constant 0 : i32
    %c0_i32_1 = arith.constant 0 : i32
    return %c0_i32, %c0_i32_0 : i32, i32
  }
  func.func @transform_4(%arg0: i32) -> (i32, i32) {
    %c0_i32 = arith.constant 0 : i32
    %c0_i32_0 = arith.constant 0 : i32
    %c0_i32_1 = arith.constant 0 : i32
    return %c0_i32, %c0_i32_0 : i32, i32
  }
  func.func @transform_5(%arg0: i32) -> (i32, i32) {
    %c0_i32 = arith.constant 0 : i32
    %c0_i32_0 = arith.constant 0 : i32
    %c0_i32_1 = arith.constant 0 : i32
    return %c0_i32, %c0_i32_0 : i32, i32
  }
  func.func @transform_6(%arg0: i32) -> (i32, i32) {
    %c0_i32 = arith.constant 0 : i32
    %c0_i32_0 = arith.constant 0 : i32
    %c0_i32_1 = arith.constant 0 : i32
    return %c0_i32, %c0_i32_0 : i32, i32
  }
  func.func @transform_7(%arg0: i32) -> (i32, i32) {
    %c0_i32 = arith.constant 0 : i32
    %c0_i32_0 = arith.constant 0 : i32
    %c0_i32_1 = arith.constant 0 : i32
    return %c0_i32, %c0_i32_0 : i32, i32
  }
  func.func @transform_8(%arg0: i32) -> (i32, i32) {
    %c0_i32 = arith.constant 0 : i32
    %c0_i32_0 = arith.constant 0 : i32
    %c0_i32_1 = arith.constant 0 : i32
    return %c0_i32, %c0_i32_0 : i32, i32
  }
  func.func @transform_9(%arg0: i32) -> (i32, i32) {
    %c0_i32 = arith.constant 0 : i32
    %c0_i32_0 = arith.constant 0 : i32
    %c0_i32_1 = arith.constant 0 : i32
    return %c0_i32, %c0_i32_0 : i32, i32
  }
  func.func @transform_10(%arg0: i32) -> (i32, i32) {
    %c0_i32 = arith.constant 0 : i32
    %c0_i32_0 = arith.constant 0 : i32
    %c0_i32_1 = arith.constant 0 : i32
    return %c0_i32, %c0_i32_0 : i32, i32
  }
  func.func @transform_11(%arg0: i32) -> (i32, i32) {
    %c0_i32 = arith.constant 0 : i32
    %c0_i32_0 = arith.constant 0 : i32
    return %arg0, %c0_i32 : i32, i32
  }
}

</mosaic_0001>

<llo_original>
// kernel: tpu_custom_call.1
$region0: #{tpu_custom_call.1}
  #allocation0 [shape = 'u32[]', space=smem, size = 0x4, offset = 0x4, fixed_abs, tag = 'smem constant byte address 0x4 - core index']
  #allocation1 [shape = 'u32[144,128]{1,0:T(1,128)}', space=vmem, size = 0x12000, scoped, tag = 'internal scratch']
  %s0 = inlined_call_operand.vmem [shape: bf16[8,360], index: 0, kind: input, shape index: {}]
  %s1 = inlined_call_operand.vmem [shape: bf16[360,256], index: 1, kind: input, shape index: {}]
  %s2 = inlined_call_operand.vmem [shape: f32[1,256], index: 2, kind: input, shape index: {}]
  %s3 = inlined_call_operand.hbm [shape: bf16[256,256], index: 3, kind: input, shape index: {}]
  %s4 = inlined_call_operand.vmem [shape: f32[1,256], index: 4, kind: input, shape index: {}]
  %s5 = inlined_call_operand.hbm [shape: bf16[256,256], index: 5, kind: input, shape index: {}]
  %s6 = inlined_call_operand.vmem [shape: f32[1,256], index: 6, kind: input, shape index: {}]
  %s7 = inlined_call_operand.hbm [shape: bf16[256,256], index: 7, kind: input, shape index: {}]
  %s8 = inlined_call_operand.vmem [shape: f32[1,256], index: 8, kind: input, shape index: {}]
  %s9 = inlined_call_operand.vmem [shape: bf16[256,208], index: 9, kind: input, shape index: {}]
  %s10 = inlined_call_operand.vmem [shape: f32[1,208], index: 10, kind: input, shape index: {}]
  %s11 = inlined_call_operand.hbm [shape: f32[8,208], index: 11, kind: output, shape index: {}]
  %s12 = sld [smem:[#allocation0]]
  $region66: #{tpu_custom_call.1} parent=0
    _
  %s14 = ssub.s32 1, %s12
  %s15 = scalar_select 0, %s14, %s12
  $region1: #{tpu_custom_call.1} parent=0
    #allocation2 [shape = 'u8[131072]{0}', space=vmem, size = 0x20000, scoped, tag = 'input window, operand 3, single buffered']
    #allocation3 [shape = 's32[1]{0}', space=sflag, size = 0x4, scoped, tag = 'scoped memory for tpu_custom_call.1']
    #allocation4 [shape = 's32[1]{0}', space=sflag, size = 0x4, scoped, tag = 'scoped memory for tpu_custom_call.1']
    #allocation5 [shape = 'u8[131072]{0}', space=vmem, size = 0x20000, scoped, tag = 'input window, operand 5, single buffered']
    #allocation6 [shape = 's32[1]{0}', space=sflag, size = 0x4, scoped, tag = 'scoped memory for tpu_custom_call.1']
    #allocation7 [shape = 'u8[131072]{0}', space=vmem, size = 0x20000, scoped, tag = 'input window, operand 7, single buffered']
    #allocation8 [shape = 'u8[8192]{0}', space=vmem, size = 0x2000, scoped, tag = 'output window, operand 0, single buffered']
    %16 = vsyncpa [#allocation3], 0
    %17 = vsyncpa [#allocation6], 0
    %18 = vsyncpa [#allocation4], 0
    // Predicated region
    $region2: #{tpu_custom_call.1} parent=1 // pred_check
      _
    $region3: #{tpu_custom_call.1} parent=1 // pred_check_branch
      %20 = sbr.rel (0) target = $region5
    $region4: #{tpu_custom_call.1} parent=1 // pred_region
      _
    $region5: #{tpu_custom_call.1} parent=1 // pred_fallthru
      _
    // Predicated region
    $region6: #{tpu_custom_call.1} parent=1 // pred_check
      _
    $region7: #{tpu_custom_call.1} parent=1 // pred_check_branch
      %22 = sbr.rel (0) target = $region9
    $region8: #{tpu_custom_call.1} parent=1 // pred_region
      _
    $region9: #{tpu_custom_call.1} parent=1 // pred_fallthru
      _
    // Predicated region
    $region10: #{tpu_custom_call.1} parent=1 // pred_check
      _
    $region11: #{tpu_custom_call.1} parent=1 // pred_check_branch
      %24 = sbr.rel (0) target = $region13
    $region12: #{tpu_custom_call.1} parent=1 // pred_region
      _
    $region13: #{tpu_custom_call.1} parent=1 // pred_fallthru
      _
    // Predicated region
    $region14: #{tpu_custom_call.1} parent=1 // pred_check
      _
    $region15: #{tpu_custom_call.1} parent=1 // pred_check_branch
      %26 = sbr.rel (0) target = $region17
    $region16: #{tpu_custom_call.1} parent=1 // pred_region
      %s28 = ssub.s32 4096, 4096
      %29 = vsyncadd [#allocation3], %s28
      %s30 = sshll.u32 [#allocation2], 4
      %s31 = int_to_ptr.vmem [resolvable:$true] %s30
      %36 = dma.hbm_to_vmem [thread:$0]  %s3, 4096, %s31, [#allocation3], 128, 128, 8
    $region17: #{tpu_custom_call.1} parent=1 // pred_fallthru
      _
    // Predicated region
    $region18: #{tpu_custom_call.1} parent=1 // pred_check
      _
    $region19: #{tpu_custom_call.1} parent=1 // pred_check_branch
      %38 = sbr.rel (0) target = $region21
    $region20: #{tpu_custom_call.1} parent=1 // pred_region
      _
    $region21: #{tpu_custom_call.1} parent=1 // pred_fallthru
      _
    // Predicated region
    $region22: #{tpu_custom_call.1} parent=1 // pred_check
      _
    $region23: #{tpu_custom_call.1} parent=1 // pred_check_branch
      %40 = sbr.rel (0) target = $region25
    $region24: #{tpu_custom_call.1} parent=1 // pred_region
      %s42 = ssub.s32 4096, 4096
      %43 = vsyncadd [#allocation6], %s42
      %s44 = sshll.u32 [#allocation5], 4
      %s45 = int_to_ptr.vmem [resolvable:$true] %s44
      %50 = dma.hbm_to_vmem [thread:$0]  %s5, 4096, %s45, [#allocation6], 128, 128, 8
    $region25: #{tpu_custom_call.1} parent=1 // pred_fallthru
      _
    // Predicated region
    $region26: #{tpu_custom_call.1} parent=1 // pred_check
      _
    $region27: #{tpu_custom_call.1} parent=1 // pred_check_branch
      %52 = sbr.rel (0) target = $region29
    $region28: #{tpu_custom_call.1} parent=1 // pred_region
      _
    $region29: #{tpu_custom_call.1} parent=1 // pred_fallthru
      _
    // Predicated region
    $region30: #{tpu_custom_call.1} parent=1 // pred_check
      _
    $region31: #{tpu_custom_call.1} parent=1 // pred_check_branch
      %54 = sbr.rel (0) target = $region33
    $region32: #{tpu_custom_call.1} parent=1 // pred_region
      %s56 = ssub.s32 4096, 4096
      %57 = vsyncadd [#allocation6], %s56
      %s58 = sshll.u32 [#allocation7], 4
      %s59 = int_to_ptr.vmem [resolvable:$true] %s58
      %64 = dma.hbm_to_vmem [thread:$0]  %s7, 4096, %s59, [#allocation6], 128, 128, 8
    $region33: #{tpu_custom_call.1} parent=1 // pred_fallthru
      _
    // Predicated region
    $region34: #{tpu_custom_call.1} parent=1 // pred_check
      _
    $region35: #{tpu_custom_call.1} parent=1 // pred_check_branch
      %66 = sbr.rel (0) target = $region37
    $region36: #{tpu_custom_call.1} parent=1 // pred_region
      _
    $region37: #{tpu_custom_call.1} parent=1 // pred_fallthru
      _
    // Predicated region
    $region38: #{tpu_custom_call.1} parent=1 // pred_check
      _
    $region39: #{tpu_custom_call.1} parent=1 // pred_check_branch
      %68 = sbr.rel (0) target = $region41
    $region40: #{tpu_custom_call.1} parent=1 // pred_region
      _
    $region41: #{tpu_custom_call.1} parent=1 // pred_fallthru
      _
    // Predicated region
    $region42: #{tpu_custom_call.1} parent=1 // pred_check
      _
    $region43: #{tpu_custom_call.1} parent=1 // pred_check_branch
      %70 = sbr.rel (0) target = $region45
    $region44: #{tpu_custom_call.1} parent=1 // pred_region
      _
    $region45: #{tpu_custom_call.1} parent=1 // pred_fallthru
      _
    // Predicated region
    $region46: #{tpu_custom_call.1} parent=1 // pred_check
      _
    $region47: #{tpu_custom_call.1} parent=1 // pred_check_branch
      %72 = sbr.rel (0) target = $region49
    $region48: #{tpu_custom_call.1} parent=1 // pred_region
      %73 = dma.done [#allocation3], 4096
    $region49: #{tpu_custom_call.1} parent=1 // pred_fallthru
      _
    // Predicated region
    $region50: #{tpu_custom_call.1} parent=1 // pred_check
      _
    $region51: #{tpu_custom_call.1} parent=1 // pred_check_branch
      %75 = sbr.rel (0) target = $region53
    $region52: #{tpu_custom_call.1} parent=1 // pred_region
      %76 = dma.done [#allocation6], 4096
    $region53: #{tpu_custom_call.1} parent=1 // pred_fallthru
      _
    // Predicated region
    $region54: #{tpu_custom_call.1} parent=1 // pred_check
      _
    $region55: #{tpu_custom_call.1} parent=1 // pred_check_branch
      %78 = sbr.rel (0) target = $region57
    $region56: #{tpu_custom_call.1} parent=1 // pred_region
      %79 = dma.done [#allocation6], 4096
    $region57: #{tpu_custom_call.1} parent=1 // pred_fallthru
      _
    %v81 = vld [vmem:[%s0] sm:$0xff]
    %v82 = vld [vmem:[%s0 + $0x8] sm:$0xf]
    %v83 = vld [vmem:[%s1] sm:$0xff]
    %v84 = vld [vmem:[%s1 + $0x8] sm:$0xff]
    %v85 = vld [vmem:[%s1 + $0x10] sm:$0xff]
    %v86 = vld [vmem:[%s1 + $0x18] sm:$0xff]
    %v87 = vld [vmem:[%s1 + $0x20] sm:$0xff]
    %v88 = vld [vmem:[%s1 + $0x28] sm:$0xff]
    %v89 = vld [vmem:[%s1 + $0x30] sm:$0xff]
    %v90 = vld [vmem:[%s1 + $0x38] sm:$0xff]
    %v91 = vld [vmem:[%s1 + $0x40] sm:$0xff]
    %v92 = vld [vmem:[%s1 + $0x48] sm:$0xff]
    %v93 = vld [vmem:[%s1 + $0x50] sm:$0xff]
    %v94 = vld [vmem:[%s1 + $0x58] sm:$0xff]
    %v95 = vld [vmem:[%s1 + $0x60] sm:$0xff]
    %v96 = vld [vmem:[%s1 + $0x68] sm:$0xff]
    %v97 = vld [vmem:[%s1 + $0x70] sm:$0xff]
    %v98 = vld [vmem:[%s1 + $0x78] sm:$0xff]
    %v99 = vld [vmem:[%s1 + $0x80] sm:$0xff]
    %v100 = vld [vmem:[%s1 + $0x88] sm:$0xff]
    %v101 = vld [vmem:[%s1 + $0x90] sm:$0xff]
    %v102 = vld [vmem:[%s1 + $0x98] sm:$0xff]
    %v103 = vld [vmem:[%s1 + $0xa0] sm:$0xff]
    %v104 = vld [vmem:[%s1 + $0xa8] sm:$0xff]
    %v105 = vld [vmem:[%s1 + $0xb0] sm:$0xff]
    %v106 = vld [vmem:[%s1 + $0xb8] sm:$0xff]
    %v107 = vld [vmem:[%s1 + $0xc0] sm:$0xff]
    %v108 = vld [vmem:[%s1 + $0xc8] sm:$0xff]
    %v109 = vld [vmem:[%s1 + $0xd0] sm:$0xff]
    %v110 = vld [vmem:[%s1 + $0xd8] sm:$0xff]
    %v111 = vld [vmem:[%s1 + $0xe0] sm:$0xff]
    %v112 = vld [vmem:[%s1 + $0xe8] sm:$0xff]
    %v113 = vld [vmem:[%s1 + $0xf0] sm:$0xff]
    %v114 = vld [vmem:[%s1 + $0xf8] sm:$0xff]
    %v115 = vld [vmem:[%s1 + $0x100] sm:$0xff]
    %v116 = vld [vmem:[%s1 + $0x108] sm:$0xff]
    %v117 = vld [vmem:[%s1 + $0x110] sm:$0xff]
    %v118 = vld [vmem:[%s1 + $0x118] sm:$0xff]
    %v119 = vld [vmem:[%s1 + $0x120] sm:$0xff]
    %v120 = vld [vmem:[%s1 + $0x128] sm:$0xff]
    %v121 = vld [vmem:[%s1 + $0x130] sm:$0xff]
    %v122 = vld [vmem:[%s1 + $0x138] sm:$0xff]
    %v123 = vld [vmem:[%s1 + $0x140] sm:$0xff]
    %v124 = vld [vmem:[%s1 + $0x148] sm:$0xff]
    %v125 = vld [vmem:[%s1 + $0x150] sm:$0xff]
    %v126 = vld [vmem:[%s1 + $0x158] sm:$0xff]
    %v127 = vld [vmem:[%s1 + $0x160] sm:$0xff]
    %v128 = vld [vmem:[%s2] sm:$0x3]
    %v130 = vlaneseq
    %v131 = vshrl.u32 %v130, 7
    %v132 = vsub.s32 0, %v131
    %v133 = vrot.slane %v128, %v132
    %v134 = vlaneseq
    %v135 = vshrl.u32 %v134, 7
    %v136 = vsub.s32 1, %v135
    %v137 = vrot.slane %v128, %v136
    %v142 = vunpack.c.l.b16 %v81
    %v143 = vunpack.c.h.b16 %v81
    %v144 = vunpack.c.l.b16 %v82
    %v145 = vpack.c.b16 %v142, %v142
    %v146 = vpack.c.b16 %v143, %v143
    %v147 = vpack.c.b16 %v144, %v144
    %v195 = vunpack.c.l.b16 %v83
    %v196 = vunpack.c.h.b16 %v83
    %v197 = vunpack.c.l.b16 %v84
    %v198 = vunpack.c.h.b16 %v84
    %v199 = vunpack.c.l.b16 %v85
    %v200 = vunpack.c.h.b16 %v85
    %v201 = vunpack.c.l.b16 %v86
    %v202 = vunpack.c.h.b16 %v86
    %v203 = vunpack.c.l.b16 %v87
    %v204 = vunpack.c.h.b16 %v87
    %v205 = vunpack.c.l.b16 %v88
    %v206 = vunpack.c.h.b16 %v88
    %v207 = vunpack.c.l.b16 %v89
    %v208 = vunpack.c.h.b16 %v89
    %v209 = vunpack.c.l.b16 %v90
    %v210 = vunpack.c.h.b16 %v90
    %v211 = vunpack.c.l.b16 %v91
    %v212 = vunpack.c.h.b16 %v91
    %v213 = vunpack.c.l.b16 %v92
    %v214 = vunpack.c.h.b16 %v92
    %v215 = vunpack.c.l.b16 %v93
    %v216 = vunpack.c.h.b16 %v93
    %v217 = vunpack.c.l.b16 %v94
    %v218 = vunpack.c.h.b16 %v94
    %v219 = vunpack.c.l.b16 %v95
    %v220 = vunpack.c.h.b16 %v95
    %v221 = vunpack.c.l.b16 %v96
    %v222 = vunpack.c.h.b16 %v96
    %v223 = vunpack.c.l.b16 %v97
    %v224 = vunpack.c.h.b16 %v97
    %v225 = vunpack.c.l.b16 %v98
    %v226 = vunpack.c.h.b16 %v98
    %v227 = vunpack.c.l.b16 %v99
    %v228 = vunpack.c.h.b16 %v99
    %v229 = vunpack.c.l.b16 %v100
    %v230 = vunpack.c.h.b16 %v100
    %v231 = vunpack.c.l.b16 %v101
    %v232 = vunpack.c.h.b16 %v101
    %v233 = vunpack.c.l.b16 %v102
    %v234 = vunpack.c.h.b16 %v102
    %v235 = vunpack.c.l.b16 %v103
    %v236 = vunpack.c.h.b16 %v103
    %v237 = vunpack.c.l.b16 %v104
    %v238 = vunpack.c.h.b16 %v104
    %v239 = vunpack.c.l.b16 %v105
    %v240 = vunpack.c.h.b16 %v105
    %v241 = vunpack.c.l.b16 %v106
    %v242 = vunpack.c.h.b16 %v106
    %v243 = vunpack.c.l.b16 %v107
    %v244 = vunpack.c.h.b16 %v107
    %v245 = vunpack.c.l.b16 %v108
    %v246 = vunpack.c.h.b16 %v108
    %v247 = vunpack.c.l.b16 %v109
    %v248 = vunpack.c.h.b16 %v109
    %v249 = vunpack.c.l.b16 %v110
    %v250 = vunpack.c.h.b16 %v110
    %v251 = vunpack.c.l.b16 %v111
    %v252 = vunpack.c.h.b16 %v111
    %v253 = vunpack.c.l.b16 %v112
    %v254 = vunpack.c.h.b16 %v112
    %v255 = vunpack.c.l.b16 %v113
    %v256 = vunpack.c.h.b16 %v113
    %v257 = vunpack.c.l.b16 %v114
    %v258 = vunpack.c.h.b16 %v114
    %v259 = vunpack.c.l.b16 %v115
    %v260 = vunpack.c.h.b16 %v115
    %v261 = vunpack.c.l.b16 %v116
    %v262 = vunpack.c.h.b16 %v116
    %v263 = vunpack.c.l.b16 %v117
    %v264 = vunpack.c.h.b16 %v117
    %v265 = vunpack.c.l.b16 %v118
    %v266 = vunpack.c.h.b16 %v118
    %v267 = vunpack.c.l.b16 %v119
    %v268 = vunpack.c.h.b16 %v119
    %v269 = vunpack.c.l.b16 %v120
    %v270 = vunpack.c.h.b16 %v120
    %v271 = vunpack.c.l.b16 %v121
    %v272 = vunpack.c.h.b16 %v121
    %v273 = vunpack.c.l.b16 %v122
    %v274 = vunpack.c.h.b16 %v122
    %v275 = vunpack.c.l.b16 %v123
    %v276 = vunpack.c.h.b16 %v123
    %v277 = vunpack.c.l.b16 %v124
    %v278 = vunpack.c.h.b16 %v124
    %v279 = vunpack.c.l.b16 %v125
    %v280 = vunpack.c.h.b16 %v125
    %v281 = vunpack.c.l.b16 %v126
    %v282 = vunpack.c.h.b16 %v126
    %v283 = vunpack.c.l.b16 %v127
    %v284 = vunpack.c.h.b16 %v127
    %v285 = vpack.c.b16 %v197, %v195
    %v286 = vpack.c.b16 %v198, %v196
    %v287 = vpack.c.b16 %v201, %v199
    %v288 = vpack.c.b16 %v202, %v200
    %v289 = vpack.c.b16 %v205, %v203
    %v290 = vpack.c.b16 %v206, %v204
    %v291 = vpack.c.b16 %v209, %v207
    %v292 = vpack.c.b16 %v210, %v208
    %v293 = vpack.c.b16 %v213, %v211
    %v294 = vpack.c.b16 %v214, %v212
    %v295 = vpack.c.b16 %v217, %v215
    %v296 = vpack.c.b16 %v218, %v216
    %v297 = vpack.c.b16 %v221, %v219
    %v298 = vpack.c.b16 %v222, %v220
    %v299 = vpack.c.b16 %v225, %v223
    %v300 = vpack.c.b16 %v226, %v224
    %v301 = vpack.c.b16 %v229, %v227
    %v302 = vpack.c.b16 %v230, %v228
    %v303 = vpack.c.b16 %v233, %v231
    %v304 = vpack.c.b16 %v234, %v232
    %v305 = vpack.c.b16 %v237, %v235
    %v306 = vpack.c.b16 %v238, %v236
    %v307 = vpack.c.b16 %v241, %v239
    %v308 = vpack.c.b16 %v242, %v240
    %v309 = vpack.c.b16 %v245, %v243
    %v310 = vpack.c.b16 %v246, %v244
    %v311 = vpack.c.b16 %v249, %v247
    %v312 = vpack.c.b16 %v250, %v248
    %v313 = vpack.c.b16 %v253, %v251
    %v314 = vpack.c.b16 %v254, %v252
    %v315 = vpack.c.b16 %v257, %v255
    %v316 = vpack.c.b16 %v258, %v256
    %v317 = vpack.c.b16 %v261, %v259
    %v318 = vpack.c.b16 %v262, %v260
    %v319 = vpack.c.b16 %v265, %v263
    %v320 = vpack.c.b16 %v266, %v264
    %v321 = vpack.c.b16 %v269, %v267
    %v322 = vpack.c.b16 %v270, %v268
    %v323 = vpack.c.b16 %v273, %v271
    %v324 = vpack.c.b16 %v274, %v272
    %v325 = vpack.c.b16 %v277, %v275
    %v326 = vpack.c.b16 %v278, %v276
    %v327 = vpack.c.b16 %v281, %v279
    %v328 = vpack.c.b16 %v282, %v280
    %v329 = vpack.c.b16 %v283, %v283
    %v330 = vpack.c.b16 %v284, %v284
    %vm375 = vcmask 850944
    %v377 = vsel %vm375, %v147, 0
    %vm379 = vcmask 1043456
    %v381 = vsel %vm379, %v329, 0
    %v384 = vsel %vm379, %v330, 0
    %386 = vmatprep.subr.bf16.mxu0 %v300
    %387 = vmatpush1.bf16.msra.mxu0 %v299
    %388 = vmatprep.subr.bf16.mxu0 %v298
    %389 = vmatpush1.bf16.msra.mxu0 %v297
    %390 = vmatprep.subr.bf16.mxu0 %v296
    %391 = vmatpush1.bf16.msra.mxu0 %v295
    %392 = vmatprep.subr.bf16.mxu0 %v294
    %393 = vmatpush1.bf16.msra.mxu0 %v293
    %394 = vmatprep.subr.bf16.mxu0 %v292
    %395 = vmatpush1.bf16.msra.mxu0 %v291
    %396 = vmatprep.subr.bf16.mxu0 %v290
    %397 = vmatpush1.bf16.msra.mxu0 %v289
    %398 = vmatprep.subr.bf16.mxu0 %v288
    %399 = vmatpush1.bf16.msra.mxu0 %v287
    %400 = vmatprep.subr.bf16.mxu0 %v286
    %401 = vmatpush1.bf16.msra.mxu0 %v285
    %402 = vmatprep.subr.bf16.mxu0 %v316
    %403 = vmatpush2.bf16.msra.mxu0 %v315
    %404 = vmatprep.subr.bf16.mxu0 %v314
    %405 = vmatpush2.bf16.msra.mxu0 %v313
    %406 = vmatprep.subr.bf16.mxu0 %v312
    %407 = vmatpush2.bf16.msra.mxu0 %v311
    %408 = vmatprep.subr.bf16.mxu0 %v310
    %409 = vmatpush2.bf16.msra.mxu0 %v309
    %410 = vmatprep.subr.bf16.mxu0 %v308
    %411 = vmatpush2.bf16.msra.mxu0 %v307
    %412 = vmatprep.subr.bf16.mxu0 %v306
    %413 = vmatpush2.bf16.msra.mxu0 %v305
    %414 = vmatprep.subr.bf16.mxu0 %v304
    %415 = vmatpush2.bf16.msra.mxu0 %v303
    %416 = vmatprep.subr.bf16.mxu0 %v302
    %417 = vmatpush2.bf16.msra.mxu0 %v301
    %418 = vmatprep.mubr.bf16.mxu0 %v146
    %419 = vmatmul.mubr.bf16.gmra.mxu0 %v145
    %v420 = vpop.f32.mrf.mxu0
    %v421 = vadd.f32 %v133, %v420
    %v422 = vpop.f32.mrf.mxu0
    %v423 = vadd.f32 %v137, %v422
    %v424 = vpop.f32.mrf.mxu0
    %v425 = vpop.f32.mrf.mxu0
    %426 = vdwg.mxu0
    %427 = vmatprep.subr.bf16.mxu0 0
    %428 = vmatpush1.bf16.msra.mxu0 0
    %429 = vmatprep.subr.bf16.mxu0 %v384
    %430 = vmatpush1.bf16.msra.mxu0 %v381
    %431 = vmatprep.subr.bf16.mxu0 %v328
    %432 = vmatpush1.bf16.msra.mxu0 %v327
    %433 = vmatprep.subr.bf16.mxu0 %v326
    %434 = vmatpush1.bf16.msra.mxu0 %v325
    %435 = vmatprep.subr.bf16.mxu0 %v324
    %436 = vmatpush1.bf16.msra.mxu0 %v323
    %437 = vmatprep.subr.bf16.mxu0 %v322
    %438 = vmatpush1.bf16.msra.mxu0 %v321
    %439 = vmatprep.subr.bf16.mxu0 %v320
    %440 = vmatpush1.bf16.msra.mxu0 %v319
    %441 = vmatprep.subr.bf16.mxu0 %v318
    %442 = vmatpush1.bf16.msra.mxu0 %v317
    %443 = vmatprep.subr.bf16.mxu0 0
    %444 = vmatpush2.bf16.msra.mxu0 0
    %445 = vmatprep.subr.bf16.mxu0 0
    %446 = vmatpush2.bf16.msra.mxu0 0
    %447 = vmatprep.subr.bf16.mxu0 0
    %448 = vmatpush2.bf16.msra.mxu0 0
    %449 = vmatprep.subr.bf16.mxu0 0
    %450 = vmatpush2.bf16.msra.mxu0 0
    %451 = vmatprep.subr.bf16.mxu0 0
    %452 = vmatpush2.bf16.msra.mxu0 0
    %453 = vmatprep.subr.bf16.mxu0 0
    %454 = vmatpush2.bf16.msra.mxu0 0
    %455 = vmatprep.subr.bf16.mxu0 0
    %456 = vmatpush2.bf16.msra.mxu0 0
    %457 = vmatprep.subr.bf16.mxu0 0
    %458 = vmatpush2.bf16.msra.mxu0 0
    %459 = vmatprep.mubr.bf16.mxu0 0
    %460 = vmatmul.mubr.bf16.gmra.mxu0 %v377
    %v461 = vpop.f32.mrf.mxu0
    %v462 = vadd.f32 %v421, %v461
    %v463 = vpop.f32.mrf.mxu0
    %v464 = vadd.f32 %v423, %v463
    %v465 = vpop.f32.mrf.mxu0
    %v466 = vpop.f32.mrf.mxu0
    %467 = vdwg.mxu0
    %v468 = vpack.c.bf16 %v462, %v462
    %v469 = vpack.c.bf16 %v464, %v464
    %v470 = vtanh.bf16.pop %v468
    %v471 = vtanh.bf16.pop %v469
    %v472 = vld [vmem:[#allocation2] sm:$0xff]
    %v473 = vld [vmem:[#allocation2 + $0x8] sm:$0xff]
    %v474 = vld [vmem:[#allocation2 + $0x10] sm:$0xff]
    %v475 = vld [vmem:[#allocation2 + $0x18] sm:$0xff]
    %v476 = vld [vmem:[#allocation2 + $0x20] sm:$0xff]
    %v477 = vld [vmem:[#allocation2 + $0x28] sm:$0xff]
    %v478 = vld [vmem:[#allocation2 + $0x30] sm:$0xff]
    %v479 = vld [vmem:[#allocation2 + $0x38] sm:$0xff]
    %v480 = vld [vmem:[#allocation2 + $0x40] sm:$0xff]
    %v481 = vld [vmem:[#allocation2 + $0x48] sm:$0xff]
    %v482 = vld [vmem:[#allocation2 + $0x50] sm:$0xff]
    %v483 = vld [vmem:[#allocation2 + $0x58] sm:$0xff]
    %v484 = vld [vmem:[#allocation2 + $0x60] sm:$0xff]
    %v485 = vld [vmem:[#allocation2 + $0x68] sm:$0xff]
    %v486 = vld [vmem:[#allocation2 + $0x70] sm:$0xff]
    %v487 = vld [vmem:[#allocation2 + $0x78] sm:$0xff]
    %v488 = vld [vmem:[#allocation2 + $0x80] sm:$0xff]
    %v489 = vld [vmem:[#allocation2 + $0x88] sm:$0xff]
    %v490 = vld [vmem:[#allocation2 + $0x90] sm:$0xff]
    %v491 = vld [vmem:[#allocation2 + $0x98] sm:$0xff]
    %v492 = vld [vmem:[#allocation2 + $0xa0] sm:$0xff]
    %v493 = vld [vmem:[#allocation2 + $0xa8] sm:$0xff]
    %v494 = vld [vmem:[#allocation2 + $0xb0] sm:$0xff]
    %v495 = vld [vmem:[#allocation2 + $0xb8] sm:$0xff]
    %v496 = vld [vmem:[#allocation2 + $0xc0] sm:$0xff]
    %v497 = vld [vmem:[#allocation2 + $0xc8] sm:$0xff]
    %v498 = vld [vmem:[#allocation2 + $0xd0] sm:$0xff]
    %v499 = vld [vmem:[#allocation2 + $0xd8] sm:$0xff]
    %v500 = vld [vmem:[#allocation2 + $0xe0] sm:$0xff]
    %v501 = vld [vmem:[#allocation2 + $0xe8] sm:$0xff]
    %v502 = vld [vmem:[#allocation2 + $0xf0] sm:$0xff]
    %v503 = vld [vmem:[#allocation2 + $0xf8] sm:$0xff]
    %v504 = vld [vmem:[%s4] sm:$0x3]
    %v506 = vlaneseq
    %v507 = vshrl.u32 %v506, 7
    %v508 = vsub.s32 0, %v507
    %v509 = vrot.slane %v504, %v508
    %v510 = vlaneseq
    %v511 = vshrl.u32 %v510, 7
    %v512 = vsub.s32 1, %v511
    %v513 = vrot.slane %v504, %v512
    %v548 = vunpack.c.l.b16 %v472
    %v549 = vunpack.c.h.b16 %v472
    %v550 = vunpack.c.l.b16 %v473
    %v551 = vunpack.c.h.b16 %v473
    %v552 = vunpack.c.l.b16 %v474
    %v553 = vunpack.c.h.b16 %v474
    %v554 = vunpack.c.l.b16 %v475
    %v555 = vunpack.c.h.b16 %v475
    %v556 = vunpack.c.l.b16 %v476
    %v557 = vunpack.c.h.b16 %v476
    %v558 = vunpack.c.l.b16 %v477
    %v559 = vunpack.c.h.b16 %v477
    %v560 = vunpack.c.l.b16 %v478
    %v561 = vunpack.c.h.b16 %v478
    %v562 = vunpack.c.l.b16 %v479
    %v563 = vunpack.c.h.b16 %v479
    %v564 = vunpack.c.l.b16 %v480
    %v565 = vunpack.c.h.b16 %v480
    %v566 = vunpack.c.l.b16 %v481
    %v567 = vunpack.c.h.b16 %v481
    %v568 = vunpack.c.l.b16 %v482
    %v569 = vunpack.c.h.b16 %v482
    %v570 = vunpack.c.l.b16 %v483
    %v571 = vunpack.c.h.b16 %v483
    %v572 = vunpack.c.l.b16 %v484
    %v573 = vunpack.c.h.b16 %v484
    %v574 = vunpack.c.l.b16 %v485
    %v575 = vunpack.c.h.b16 %v485
    %v576 = vunpack.c.l.b16 %v486
    %v577 = vunpack.c.h.b16 %v486
    %v578 = vunpack.c.l.b16 %v487
    %v579 = vunpack.c.h.b16 %v487
    %v580 = vunpack.c.l.b16 %v488
    %v581 = vunpack.c.h.b16 %v488
    %v582 = vunpack.c.l.b16 %v489
    %v583 = vunpack.c.h.b16 %v489
    %v584 = vunpack.c.l.b16 %v490
    %v585 = vunpack.c.h.b16 %v490
    %v586 = vunpack.c.l.b16 %v491
    %v587 = vunpack.c.h.b16 %v491
    %v588 = vunpack.c.l.b16 %v492
    %v589 = vunpack.c.h.b16 %v492
    %v590 = vunpack.c.l.b16 %v493
    %v591 = vunpack.c.h.b16 %v493
    %v592 = vunpack.c.l.b16 %v494
    %v593 = vunpack.c.h.b16 %v494
    %v594 = vunpack.c.l.b16 %v495
    %v595 = vunpack.c.h.b16 %v495
    %v596 = vunpack.c.l.b16 %v496
    %v597 = vunpack.c.h.b16 %v496
    %v598 = vunpack.c.l.b16 %v497
    %v599 = vunpack.c.h.b16 %v497
    %v600 = vunpack.c.l.b16 %v498
    %v601 = vunpack.c.h.b16 %v498
    %v602 = vunpack.c.l.b16 %v499
    %v603 = vunpack.c.h.b16 %v499
    %v604 = vunpack.c.l.b16 %v500
    %v605 = vunpack.c.h.b16 %v500
    %v606 = vunpack.c.l.b16 %v501
    %v607 = vunpack.c.h.b16 %v501
    %v608 = vunpack.c.l.b16 %v502
    %v609 = vunpack.c.h.b16 %v502
    %v610 = vunpack.c.l.b16 %v503
    %v611 = vunpack.c.h.b16 %v503
    %v612 = vpack.c.b16 %v550, %v548
    %v613 = vpack.c.b16 %v551, %v549
    %v614 = vpack.c.b16 %v554, %v552
    %v615 = vpack.c.b16 %v555, %v553
    %v616 = vpack.c.b16 %v558, %v556
    %v617 = vpack.c.b16 %v559, %v557
    %v618 = vpack.c.b16 %v562, %v560
    %v619 = vpack.c.b16 %v563, %v561
    %v620 = vpack.c.b16 %v566, %v564
    %v621 = vpack.c.b16 %v567, %v565
    %v622 = vpack.c.b16 %v570, %v568
    %v623 = vpack.c.b16 %v571, %v569
    %v624 = vpack.c.b16 %v574, %v572
    %v625 = vpack.c.b16 %v575, %v573
    %v626 = vpack.c.b16 %v578, %v576
    %v627 = vpack.c.b16 %v579, %v577
    %v628 = vpack.c.b16 %v582, %v580
    %v629 = vpack.c.b16 %v583, %v581
    %v630 = vpack.c.b16 %v586, %v584
    %v631 = vpack.c.b16 %v587, %v585
    %v632 = vpack.c.b16 %v590, %v588
    %v633 = vpack.c.b16 %v591, %v589
    %v634 = vpack.c.b16 %v594, %v592
    %v635 = vpack.c.b16 %v595, %v593
    %v636 = vpack.c.b16 %v598, %v596
    %v637 = vpack.c.b16 %v599, %v597
    %v638 = vpack.c.b16 %v602, %v600
    %v639 = vpack.c.b16 %v603, %v601
    %v640 = vpack.c.b16 %v606, %v604
    %v641 = vpack.c.b16 %v607, %v605
    %v642 = vpack.c.b16 %v610, %v608
    %v643 = vpack.c.b16 %v611, %v609
    %676 = vmatprep.subr.bf16.mxu0 %v627
    %677 = vmatpush1.bf16.msra.mxu0 %v626
    %678 = vmatprep.subr.bf16.mxu0 %v625
    %679 = vmatpush1.bf16.msra.mxu0 %v624
    %680 = vmatprep.subr.bf16.mxu0 %v623
    %681 = vmatpush1.bf16.msra.mxu0 %v622
    %682 = vmatprep.subr.bf16.mxu0 %v621
    %683 = vmatpush1.bf16.msra.mxu0 %v620
    %684 = vmatprep.subr.bf16.mxu0 %v619
    %685 = vmatpush1.bf16.msra.mxu0 %v618
    %686 = vmatprep.subr.bf16.mxu0 %v617
    %687 = vmatpush1.bf16.msra.mxu0 %v616
    %688 = vmatprep.subr.bf16.mxu0 %v615
    %689 = vmatpush1.bf16.msra.mxu0 %v614
    %690 = vmatprep.subr.bf16.mxu0 %v613
    %691 = vmatpush1.bf16.msra.mxu0 %v612
    %692 = vmatprep.subr.bf16.mxu0 %v643
    %693 = vmatpush2.bf16.msra.mxu0 %v642
    %694 = vmatprep.subr.bf16.mxu0 %v641
    %695 = vmatpush2.bf16.msra.mxu0 %v640
    %696 = vmatprep.subr.bf16.mxu0 %v639
    %697 = vmatpush2.bf16.msra.mxu0 %v638
    %698 = vmatprep.subr.bf16.mxu0 %v637
    %699 = vmatpush2.bf16.msra.mxu0 %v636
    %700 = vmatprep.subr.bf16.mxu0 %v635
    %701 = vmatpush2.bf16.msra.mxu0 %v634
    %702 = vmatprep.subr.bf16.mxu0 %v633
    %703 = vmatpush2.bf16.msra.mxu0 %v632
    %704 = vmatprep.subr.bf16.mxu0 %v631
    %705 = vmatpush2.bf16.msra.mxu0 %v630
    %706 = vmatprep.subr.bf16.mxu0 %v629
    %707 = vmatpush2.bf16.msra.mxu0 %v628
    %708 = vmatprep.mubr.bf16.mxu0 %v471
    %709 = vmatmul.mubr.bf16.gmra.mxu0 %v470
    %v710 = vpop.f32.mrf.mxu0
    %v711 = vadd.f32 %v509, %v710
    %v712 = vpop.f32.mrf.mxu0
    %v713 = vadd.f32 %v513, %v712
    %v714 = vpop.f32.mrf.mxu0
    %v715 = vpop.f32.mrf.mxu0
    %716 = vdwg.mxu0
    %v717 = vpack.c.bf16 %v711, %v711
    %v718 = vpack.c.bf16 %v713, %v713
    %v719 = vtanh.bf16.pop %v717
    %v720 = vtanh.bf16.pop %v718
    %v721 = vld [vmem:[#allocation5] sm:$0xff]
    %v722 = vld [vmem:[#allocation5 + $0x8] sm:$0xff]
    %v723 = vld [vmem:[#allocation5 + $0x10] sm:$0xff]
    %v724 = vld [vmem:[#allocation5 + $0x18] sm:$0xff]
    %v725 = vld [vmem:[#allocation5 + $0x20] sm:$0xff]
    %v726 = vld [vmem:[#allocation5 + $0x28] sm:$0xff]
    %v727 = vld [vmem:[#allocation5 + $0x30] sm:$0xff]
    %v728 = vld [vmem:[#allocation5 + $0x38] sm:$0xff]
    %v729 = vld [vmem:[#allocation5 + $0x40] sm:$0xff]
    %v730 = vld [vmem:[#allocation5 + $0x48] sm:$0xff]
    %v731 = vld [vmem:[#allocation5 + $0x50] sm:$0xff]
    %v732 = vld [vmem:[#allocation5 + $0x58] sm:$0xff]
    %v733 = vld [vmem:[#allocation5 + $0x60] sm:$0xff]
    %v734 = vld [vmem:[#allocation5 + $0x68] sm:$0xff]
    %v735 = vld [vmem:[#allocation5 + $0x70] sm:$0xff]
    %v736 = vld [vmem:[#allocation5 + $0x78] sm:$0xff]
    %v737 = vld [vmem:[#allocation5 + $0x80] sm:$0xff]
    %v738 = vld [vmem:[#allocation5 + $0x88] sm:$0xff]
    %v739 = vld [vmem:[#allocation5 + $0x90] sm:$0xff]
    %v740 = vld [vmem:[#allocation5 + $0x98] sm:$0xff]
    %v741 = vld [vmem:[#allocation5 + $0xa0] sm:$0xff]
    %v742 = vld [vmem:[#allocation5 + $0xa8] sm:$0xff]
    %v743 = vld [vmem:[#allocation5 + $0xb0] sm:$0xff]
    %v744 = vld [vmem:[#allocation5 + $0xb8] sm:$0xff]
    %v745 = vld [vmem:[#allocation5 + $0xc0] sm:$0xff]
    %v746 = vld [vmem:[#allocation5 + $0xc8] sm:$0xff]
    %v747 = vld [vmem:[#allocation5 + $0xd0] sm:$0xff]
    %v748 = vld [vmem:[#allocation5 + $0xd8] sm:$0xff]
    %v749 = vld [vmem:[#allocation5 + $0xe0] sm:$0xff]
    %v750 = vld [vmem:[#allocation5 + $0xe8] sm:$0xff]
    %v751 = vld [vmem:[#allocation5 + $0xf0] sm:$0xff]
    %v752 = vld [vmem:[#allocation5 + $0xf8] sm:$0xff]
    %v753 = vld [vmem:[%s6] sm:$0x3]
    %v755 = vlaneseq
    %v756 = vshrl.u32 %v755, 7
    %v757 = vsub.s32 0, %v756
    %v758 = vrot.slane %v753, %v757
    %v759 = vlaneseq
    %v760 = vshrl.u32 %v759, 7
    %v761 = vsub.s32 1, %v760
    %v762 = vrot.slane %v753, %v761
    %v797 = vunpack.c.l.b16 %v721
    %v798 = vunpack.c.h.b16 %v721
    %v799 = vunpack.c.l.b16 %v722
    %v800 = vunpack.c.h.b16 %v722
    %v801 = vunpack.c.l.b16 %v723
    %v802 = vunpack.c.h.b16 %v723
    %v803 = vunpack.c.l.b16 %v724
    %v804 = vunpack.c.h.b16 %v724
    %v805 = vunpack.c.l.b16 %v725
    %v806 = vunpack.c.h.b16 %v725
    %v807 = vunpack.c.l.b16 %v726
    %v808 = vunpack.c.h.b16 %v726
    %v809 = vunpack.c.l.b16 %v727
    %v810 = vunpack.c.h.b16 %v727
    %v811 = vunpack.c.l.b16 %v728
    %v812 = vunpack.c.h.b16 %v728
    %v813 = vunpack.c.l.b16 %v729
    %v814 = vunpack.c.h.b16 %v729
    %v815 = vunpack.c.l.b16 %v730
    %v816 = vunpack.c.h.b16 %v730
    %v817 = vunpack.c.l.b16 %v731
    %v818 = vunpack.c.h.b16 %v731
    %v819 = vunpack.c.l.b16 %v732
    %v820 = vunpack.c.h.b16 %v732
    %v821 = vunpack.c.l.b16 %v733
    %v822 = vunpack.c.h.b16 %v733
    %v823 = vunpack.c.l.b16 %v734
    %v824 = vunpack.c.h.b16 %v734
    %v825 = vunpack.c.l.b16 %v735
    %v826 = vunpack.c.h.b16 %v735
    %v827 = vunpack.c.l.b16 %v736
    %v828 = vunpack.c.h.b16 %v736
    %v829 = vunpack.c.l.b16 %v737
    %v830 = vunpack.c.h.b16 %v737
    %v831 = vunpack.c.l.b16 %v738
    %v832 = vunpack.c.h.b16 %v738
    %v833 = vunpack.c.l.b16 %v739
    %v834 = vunpack.c.h.b16 %v739
    %v835 = vunpack.c.l.b16 %v740
    %v836 = vunpack.c.h.b16 %v740
    %v837 = vunpack.c.l.b16 %v741
    %v838 = vunpack.c.h.b16 %v741
    %v839 = vunpack.c.l.b16 %v742
    %v840 = vunpack.c.h.b16 %v742
    %v841 = vunpack.c.l.b16 %v743
    %v842 = vunpack.c.h.b16 %v743
    %v843 = vunpack.c.l.b16 %v744
    %v844 = vunpack.c.h.b16 %v744
    %v845 = vunpack.c.l.b16 %v745
    %v846 = vunpack.c.h.b16 %v745
    %v847 = vunpack.c.l.b16 %v746
    %v848 = vunpack.c.h.b16 %v746
    %v849 = vunpack.c.l.b16 %v747
    %v850 = vunpack.c.h.b16 %v747
    %v851 = vunpack.c.l.b16 %v748
    %v852 = vunpack.c.h.b16 %v748
    %v853 = vunpack.c.l.b16 %v749
    %v854 = vunpack.c.h.b16 %v749
    %v855 = vunpack.c.l.b16 %v750
    %v856 = vunpack.c.h.b16 %v750
    %v857 = vunpack.c.l.b16 %v751
    %v858 = vunpack.c.h.b16 %v751
    %v859 = vunpack.c.l.b16 %v752
    %v860 = vunpack.c.h.b16 %v752
    %v861 = vpack.c.b16 %v799, %v797
    %v862 = vpack.c.b16 %v800, %v798
    %v863 = vpack.c.b16 %v803, %v801
    %v864 = vpack.c.b16 %v804, %v802
    %v865 = vpack.c.b16 %v807, %v805
    %v866 = vpack.c.b16 %v808, %v806
    %v867 = vpack.c.b16 %v811, %v809
    %v868 = vpack.c.b16 %v812, %v810
    %v869 = vpack.c.b16 %v815, %v813
    %v870 = vpack.c.b16 %v816, %v814
    %v871 = vpack.c.b16 %v819, %v817
    %v872 = vpack.c.b16 %v820, %v818
    %v873 = vpack.c.b16 %v823, %v821
    %v874 = vpack.c.b16 %v824, %v822
    %v875 = vpack.c.b16 %v827, %v825
    %v876 = vpack.c.b16 %v828, %v826
    %v877 = vpack.c.b16 %v831, %v829
    %v878 = vpack.c.b16 %v832, %v830
    %v879 = vpack.c.b16 %v835, %v833
    %v880 = vpack.c.b16 %v836, %v834
    %v881 = vpack.c.b16 %v839, %v837
    %v882 = vpack.c.b16 %v840, %v838
    %v883 = vpack.c.b16 %v843, %v841
    %v884 = vpack.c.b16 %v844, %v842
    %v885 = vpack.c.b16 %v847, %v845
    %v886 = vpack.c.b16 %v848, %v846
    %v887 = vpack.c.b16 %v851, %v849
    %v888 = vpack.c.b16 %v852, %v850
    %v889 = vpack.c.b16 %v855, %v853
    %v890 = vpack.c.b16 %v856, %v854
    %v891 = vpack.c.b16 %v859, %v857
    %v892 = vpack.c.b16 %v860, %v858
    %925 = vmatprep.subr.bf16.mxu0 %v876
    %926 = vmatpush1.bf16.msra.mxu0 %v875
    %927 = vmatprep.subr.bf16.mxu0 %v874
    %928 = vmatpush1.bf16.msra.mxu0 %v873
    %929 = vmatprep.subr.bf16.mxu0 %v872
    %930 = vmatpush1.bf16.msra.mxu0 %v871
    %931 = vmatprep.subr.bf16.mxu0 %v870
    %932 = vmatpush1.bf16.msra.mxu0 %v869
    %933 = vmatprep.subr.bf16.mxu0 %v868
    %934 = vmatpush1.bf16.msra.mxu0 %v867
    %935 = vmatprep.subr.bf16.mxu0 %v866
    %936 = vmatpush1.bf16.msra.mxu0 %v865
    %937 = vmatprep.subr.bf16.mxu0 %v864
    %938 = vmatpush1.bf16.msra.mxu0 %v863
    %939 = vmatprep.subr.bf16.mxu0 %v862
    %940 = vmatpush1.bf16.msra.mxu0 %v861
    %941 = vmatprep.subr.bf16.mxu0 %v892
    %942 = vmatpush2.bf16.msra.mxu0 %v891
    %943 = vmatprep.subr.bf16.mxu0 %v890
    %944 = vmatpush2.bf16.msra.mxu0 %v889
    %945 = vmatprep.subr.bf16.mxu0 %v888
    %946 = vmatpush2.bf16.msra.mxu0 %v887
    %947 = vmatprep.subr.bf16.mxu0 %v886
    %948 = vmatpush2.bf16.msra.mxu0 %v885
    %949 = vmatprep.subr.bf16.mxu0 %v884
    %950 = vmatpush2.bf16.msra.mxu0 %v883
    %951 = vmatprep.subr.bf16.mxu0 %v882
    %952 = vmatpush2.bf16.msra.mxu0 %v881
    %953 = vmatprep.subr.bf16.mxu0 %v880
    %954 = vmatpush2.bf16.msra.mxu0 %v879
    %955 = vmatprep.subr.bf16.mxu0 %v878
    %956 = vmatpush2.bf16.msra.mxu0 %v877
    %957 = vmatprep.mubr.bf16.mxu0 %v720
    %958 = vmatmul.mubr.bf16.gmra.mxu0 %v719
    %v959 = vpop.f32.mrf.mxu0
    %v960 = vadd.f32 %v758, %v959
    %v961 = vpop.f32.mrf.mxu0
    %v962 = vadd.f32 %v762, %v961
    %v963 = vpop.f32.mrf.mxu0
    %v964 = vpop.f32.mrf.mxu0
    %965 = vdwg.mxu0
    %v966 = vpack.c.bf16 %v960, %v960
    %v967 = vpack.c.bf16 %v962, %v962
    %v968 = vtanh.bf16.pop %v966
    %v969 = vtanh.bf16.pop %v967
    %v970 = vld [vmem:[#allocation7] sm:$0xff]
    %v971 = vld [vmem:[#allocation7 + $0x8] sm:$0xff]
    %v972 = vld [vmem:[#allocation7 + $0x10] sm:$0xff]
    %v973 = vld [vmem:[#allocation7 + $0x18] sm:$0xff]
    %v974 = vld [vmem:[#allocation7 + $0x20] sm:$0xff]
    %v975 = vld [vmem:[#allocation7 + $0x28] sm:$0xff]
    %v976 = vld [vmem:[#allocation7 + $0x30] sm:$0xff]
    %v977 = vld [vmem:[#allocation7 + $0x38] sm:$0xff]
    %v978 = vld [vmem:[#allocation7 + $0x40] sm:$0xff]
    %v979 = vld [vmem:[#allocation7 + $0x48] sm:$0xff]
    %v980 = vld [vmem:[#allocation7 + $0x50] sm:$0xff]
    %v981 = vld [vmem:[#allocation7 + $0x58] sm:$0xff]
    %v982 = vld [vmem:[#allocation7 + $0x60] sm:$0xff]
    %v983 = vld [vmem:[#allocation7 + $0x68] sm:$0xff]
    %v984 = vld [vmem:[#allocation7 + $0x70] sm:$0xff]
    %v985 = vld [vmem:[#allocation7 + $0x78] sm:$0xff]
    %v986 = vld [vmem:[#allocation7 + $0x80] sm:$0xff]
    %v987 = vld [vmem:[#allocation7 + $0x88] sm:$0xff]
    %v988 = vld [vmem:[#allocation7 + $0x90] sm:$0xff]
    %v989 = vld [vmem:[#allocation7 + $0x98] sm:$0xff]
    %v990 = vld [vmem:[#allocation7 + $0xa0] sm:$0xff]
    %v991 = vld [vmem:[#allocation7 + $0xa8] sm:$0xff]
    %v992 = vld [vmem:[#allocation7 + $0xb0] sm:$0xff]
    %v993 = vld [vmem:[#allocation7 + $0xb8] sm:$0xff]
    %v994 = vld [vmem:[#allocation7 + $0xc0] sm:$0xff]
    %v995 = vld [vmem:[#allocation7 + $0xc8] sm:$0xff]
    %v996 = vld [vmem:[#allocation7 + $0xd0] sm:$0xff]
    %v997 = vld [vmem:[#allocation7 + $0xd8] sm:$0xff]
    %v998 = vld [vmem:[#allocation7 + $0xe0] sm:$0xff]
    %v999 = vld [vmem:[#allocation7 + $0xe8] sm:$0xff]
    %v1000 = vld [vmem:[#allocation7 + $0xf0] sm:$0xff]
    %v1001 = vld [vmem:[#allocation7 + $0xf8] sm:$0xff]
    %v1002 = vld [vmem:[%s8] sm:$0x3]
    %v1004 = vlaneseq
    %v1005 = vshrl.u32 %v1004, 7
    %v1006 = vsub.s32 0, %v1005
    %v1007 = vrot.slane %v1002, %v1006
    %v1008 = vlaneseq
    %v1009 = vshrl.u32 %v1008, 7
    %v1010 = vsub.s32 1, %v1009
    %v1011 = vrot.slane %v1002, %v1010
    %v1046 = vunpack.c.l.b16 %v970
    %v1047 = vunpack.c.h.b16 %v970
    %v1048 = vunpack.c.l.b16 %v971
    %v1049 = vunpack.c.h.b16 %v971
    %v1050 = vunpack.c.l.b16 %v972
    %v1051 = vunpack.c.h.b16 %v972
    %v1052 = vunpack.c.l.b16 %v973
    %v1053 = vunpack.c.h.b16 %v973
    %v1054 = vunpack.c.l.b16 %v974
    %v1055 = vunpack.c.h.b16 %v974
    %v1056 = vunpack.c.l.b16 %v975
    %v1057 = vunpack.c.h.b16 %v975
    %v1058 = vunpack.c.l.b16 %v976
    %v1059 = vunpack.c.h.b16 %v976
    %v1060 = vunpack.c.l.b16 %v977
    %v1061 = vunpack.c.h.b16 %v977
    %v1062 = vunpack.c.l.b16 %v978
    %v1063 = vunpack.c.h.b16 %v978
    %v1064 = vunpack.c.l.b16 %v979
    %v1065 = vunpack.c.h.b16 %v979
    %v1066 = vunpack.c.l.b16 %v980
    %v1067 = vunpack.c.h.b16 %v980
    %v1068 = vunpack.c.l.b16 %v981
    %v1069 = vunpack.c.h.b16 %v981
    %v1070 = vunpack.c.l.b16 %v982
    %v1071 = vunpack.c.h.b16 %v982
    %v1072 = vunpack.c.l.b16 %v983
    %v1073 = vunpack.c.h.b16 %v983
    %v1074 = vunpack.c.l.b16 %v984
    %v1075 = vunpack.c.h.b16 %v984
    %v1076 = vunpack.c.l.b16 %v985
    %v1077 = vunpack.c.h.b16 %v985
    %v1078 = vunpack.c.l.b16 %v986
    %v1079 = vunpack.c.h.b16 %v986
    %v1080 = vunpack.c.l.b16 %v987
    %v1081 = vunpack.c.h.b16 %v987
    %v1082 = vunpack.c.l.b16 %v988
    %v1083 = vunpack.c.h.b16 %v988
    %v1084 = vunpack.c.l.b16 %v989
    %v1085 = vunpack.c.h.b16 %v989
    %v1086 = vunpack.c.l.b16 %v990
    %v1087 = vunpack.c.h.b16 %v990
    %v1088 = vunpack.c.l.b16 %v991
    %v1089 = vunpack.c.h.b16 %v991
    %v1090 = vunpack.c.l.b16 %v992
    %v1091 = vunpack.c.h.b16 %v992
    %v1092 = vunpack.c.l.b16 %v993
    %v1093 = vunpack.c.h.b16 %v993
    %v1094 = vunpack.c.l.b16 %v994
    %v1095 = vunpack.c.h.b16 %v994
    %v1096 = vunpack.c.l.b16 %v995
    %v1097 = vunpack.c.h.b16 %v995
    %v1098 = vunpack.c.l.b16 %v996
    %v1099 = vunpack.c.h.b16 %v996
    %v1100 = vunpack.c.l.b16 %v997
    %v1101 = vunpack.c.h.b16 %v997
    %v1102 = vunpack.c.l.b16 %v998
    %v1103 = vunpack.c.h.b16 %v998
    %v1104 = vunpack.c.l.b16 %v999
    %v1105 = vunpack.c.h.b16 %v999
    %v1106 = vunpack.c.l.b16 %v1000
    %v1107 = vunpack.c.h.b16 %v1000
    %v1108 = vunpack.c.l.b16 %v1001
    %v1109 = vunpack.c.h.b16 %v1001
    %v1110 = vpack.c.b16 %v1048, %v1046
    %v1111 = vpack.c.b16 %v1049, %v1047
    %v1112 = vpack.c.b16 %v1052, %v1050
    %v1113 = vpack.c.b16 %v1053, %v1051
    %v1114 = vpack.c.b16 %v1056, %v1054
    %v1115 = vpack.c.b16 %v1057, %v1055
    %v1116 = vpack.c.b16 %v1060, %v1058
    %v1117 = vpack.c.b16 %v1061, %v1059
    %v1118 = vpack.c.b16 %v1064, %v1062
    %v1119 = vpack.c.b16 %v1065, %v1063
    %v1120 = vpack.c.b16 %v1068, %v1066
    %v1121 = vpack.c.b16 %v1069, %v1067
    %v1122 = vpack.c.b16 %v1072, %v1070
    %v1123 = vpack.c.b16 %v1073, %v1071
    %v1124 = vpack.c.b16 %v1076, %v1074
    %v1125 = vpack.c.b16 %v1077, %v1075
    %v1126 = vpack.c.b16 %v1080, %v1078
    %v1127 = vpack.c.b16 %v1081, %v1079
    %v1128 = vpack.c.b16 %v1084, %v1082
    %v1129 = vpack.c.b16 %v1085, %v1083
    %v1130 = vpack.c.b16 %v1088, %v1086
    %v1131 = vpack.c.b16 %v1089, %v1087
    %v1132 = vpack.c.b16 %v1092, %v1090
    %v1133 = vpack.c.b16 %v1093, %v1091
    %v1134 = vpack.c.b16 %v1096, %v1094
    %v1135 = vpack.c.b16 %v1097, %v1095
    %v1136 = vpack.c.b16 %v1100, %v1098
    %v1137 = vpack.c.b16 %v1101, %v1099
    %v1138 = vpack.c.b16 %v1104, %v1102
    %v1139 = vpack.c.b16 %v1105, %v1103
    %v1140 = vpack.c.b16 %v1108, %v1106
    %v1141 = vpack.c.b16 %v1109, %v1107
    %1174 = vmatprep.subr.bf16.mxu0 %v1125
    %1175 = vmatpush1.bf16.msra.mxu0 %v1124
    %1176 = vmatprep.subr.bf16.mxu0 %v1123
    %1177 = vmatpush1.bf16.msra.mxu0 %v1122
    %1178 = vmatprep.subr.bf16.mxu0 %v1121
    %1179 = vmatpush1.bf16.msra.mxu0 %v1120
    %1180 = vmatprep.subr.bf16.mxu0 %v1119
    %1181 = vmatpush1.bf16.msra.mxu0 %v1118
    %1182 = vmatprep.subr.bf16.mxu0 %v1117
    %1183 = vmatpush1.bf16.msra.mxu0 %v1116
    %1184 = vmatprep.subr.bf16.mxu0 %v1115
    %1185 = vmatpush1.bf16.msra.mxu0 %v1114
    %1186 = vmatprep.subr.bf16.mxu0 %v1113
    %1187 = vmatpush1.bf16.msra.mxu0 %v1112
    %1188 = vmatprep.subr.bf16.mxu0 %v1111
    %1189 = vmatpush1.bf16.msra.mxu0 %v1110
    %1190 = vmatprep.subr.bf16.mxu0 %v1141
    %1191 = vmatpush2.bf16.msra.mxu0 %v1140
    %1192 = vmatprep.subr.bf16.mxu0 %v1139
    %1193 = vmatpush2.bf16.msra.mxu0 %v1138
    %1194 = vmatprep.subr.bf16.mxu0 %v1137
    %1195 = vmatpush2.bf16.msra.mxu0 %v1136
    %1196 = vmatprep.subr.bf16.mxu0 %v1135
    %1197 = vmatpush2.bf16.msra.mxu0 %v1134
    %1198 = vmatprep.subr.bf16.mxu0 %v1133
    %1199 = vmatpush2.bf16.msra.mxu0 %v1132
    %1200 = vmatprep.subr.bf16.mxu0 %v1131
    %1201 = vmatpush2.bf16.msra.mxu0 %v1130
    %1202 = vmatprep.subr.bf16.mxu0 %v1129
    %1203 = vmatpush2.bf16.msra.mxu0 %v1128
    %1204 = vmatprep.subr.bf16.mxu0 %v1127
    %1205 = vmatpush2.bf16.msra.mxu0 %v1126
    %1206 = vmatprep.mubr.bf16.mxu0 %v969
    %1207 = vmatmul.mubr.bf16.gmra.mxu0 %v968
    %v1208 = vpop.f32.mrf.mxu0
    %v1209 = vadd.f32 %v1007, %v1208
    %v1210 = vpop.f32.mrf.mxu0
    %v1211 = vadd.f32 %v1011, %v1210
    %v1212 = vpop.f32.mrf.mxu0
    %v1213 = vpop.f32.mrf.mxu0
    %1214 = vdwg.mxu0
    %v1215 = vpack.c.bf16 %v1209, %v1209
    %v1216 = vpack.c.bf16 %v1211, %v1211
    %v1217 = vtanh.bf16.pop %v1215
    %v1218 = vtanh.bf16.pop %v1216
    %v1219 = vld [vmem:[%s9] sm:$0xff]
    %v1220 = vld [vmem:[%s9 + $0x8] sm:$0xff]
    %v1221 = vld [vmem:[%s9 + $0x10] sm:$0xff]
    %v1222 = vld [vmem:[%s9 + $0x18] sm:$0xff]
    %v1223 = vld [vmem:[%s9 + $0x20] sm:$0xff]
    %v1224 = vld [vmem:[%s9 + $0x28] sm:$0xff]
    %v1225 = vld [vmem:[%s9 + $0x30] sm:$0xff]
    %v1226 = vld [vmem:[%s9 + $0x38] sm:$0xff]
    %v1227 = vld [vmem:[%s9 + $0x40] sm:$0xff]
    %v1228 = vld [vmem:[%s9 + $0x48] sm:$0xff]
    %v1229 = vld [vmem:[%s9 + $0x50] sm:$0xff]
    %v1230 = vld [vmem:[%s9 + $0x58] sm:$0xff]
    %v1231 = vld [vmem:[%s9 + $0x60] sm:$0xff]
    %v1232 = vld [vmem:[%s9 + $0x68] sm:$0xff]
    %v1233 = vld [vmem:[%s9 + $0x70] sm:$0xff]
    %v1234 = vld [vmem:[%s9 + $0x78] sm:$0xff]
    %v1235 = vld [vmem:[%s9 + $0x80] sm:$0xff]
    %v1236 = vld [vmem:[%s9 + $0x88] sm:$0xff]
    %v1237 = vld [vmem:[%s9 + $0x90] sm:$0xff]
    %v1238 = vld [vmem:[%s9 + $0x98] sm:$0xff]
    %v1239 = vld [vmem:[%s9 + $0xa0] sm:$0xff]
    %v1240 = vld [vmem:[%s9 + $0xa8] sm:$0xff]
    %v1241 = vld [vmem:[%s9 + $0xb0] sm:$0xff]
    %v1242 = vld [vmem:[%s9 + $0xb8] sm:$0xff]
    %v1243 = vld [vmem:[%s9 + $0xc0] sm:$0xff]
    %v1244 = vld [vmem:[%s9 + $0xc8] sm:$0xff]
    %v1245 = vld [vmem:[%s9 + $0xd0] sm:$0xff]
    %v1246 = vld [vmem:[%s9 + $0xd8] sm:$0xff]
    %v1247 = vld [vmem:[%s9 + $0xe0] sm:$0xff]
    %v1248 = vld [vmem:[%s9 + $0xe8] sm:$0xff]
    %v1249 = vld [vmem:[%s9 + $0xf0] sm:$0xff]
    %v1250 = vld [vmem:[%s9 + $0xf8] sm:$0xff]
    %v1251 = vld [vmem:[%s10] sm:$0x3]
    %v1253 = vlaneseq
    %v1254 = vshrl.u32 %v1253, 7
    %v1255 = vsub.s32 0, %v1254
    %v1256 = vrot.slane %v1251, %v1255
    %v1257 = vlaneseq
    %v1258 = vshrl.u32 %v1257, 7
    %v1259 = vsub.s32 1, %v1258
    %v1260 = vrot.slane %v1251, %v1259
    %v1295 = vunpack.c.l.b16 %v1219
    %v1296 = vunpack.c.h.b16 %v1219
    %v1297 = vunpack.c.l.b16 %v1220
    %v1298 = vunpack.c.h.b16 %v1220
    %v1299 = vunpack.c.l.b16 %v1221
    %v1300 = vunpack.c.h.b16 %v1221
    %v1301 = vunpack.c.l.b16 %v1222
    %v1302 = vunpack.c.h.b16 %v1222
    %v1303 = vunpack.c.l.b16 %v1223
    %v1304 = vunpack.c.h.b16 %v1223
    %v1305 = vunpack.c.l.b16 %v1224
    %v1306 = vunpack.c.h.b16 %v1224
    %v1307 = vunpack.c.l.b16 %v1225
    %v1308 = vunpack.c.h.b16 %v1225
    %v1309 = vunpack.c.l.b16 %v1226
    %v1310 = vunpack.c.h.b16 %v1226
    %v1311 = vunpack.c.l.b16 %v1227
    %v1312 = vunpack.c.h.b16 %v1227
    %v1313 = vunpack.c.l.b16 %v1228
    %v1314 = vunpack.c.h.b16 %v1228
    %v1315 = vunpack.c.l.b16 %v1229
    %v1316 = vunpack.c.h.b16 %v1229
    %v1317 = vunpack.c.l.b16 %v1230
    %v1318 = vunpack.c.h.b16 %v1230
    %v1319 = vunpack.c.l.b16 %v1231
    %v1320 = vunpack.c.h.b16 %v1231
    %v1321 = vunpack.c.l.b16 %v1232
    %v1322 = vunpack.c.h.b16 %v1232
    %v1323 = vunpack.c.l.b16 %v1233
    %v1324 = vunpack.c.h.b16 %v1233
    %v1325 = vunpack.c.l.b16 %v1234
    %v1326 = vunpack.c.h.b16 %v1234
    %v1327 = vunpack.c.l.b16 %v1235
    %v1328 = vunpack.c.h.b16 %v1235
    %v1329 = vunpack.c.l.b16 %v1236
    %v1330 = vunpack.c.h.b16 %v1236
    %v1331 = vunpack.c.l.b16 %v1237
    %v1332 = vunpack.c.h.b16 %v1237
    %v1333 = vunpack.c.l.b16 %v1238
    %v1334 = vunpack.c.h.b16 %v1238
    %v1335 = vunpack.c.l.b16 %v1239
    %v1336 = vunpack.c.h.b16 %v1239
    %v1337 = vunpack.c.l.b16 %v1240
    %v1338 = vunpack.c.h.b16 %v1240
    %v1339 = vunpack.c.l.b16 %v1241
    %v1340 = vunpack.c.h.b16 %v1241
    %v1341 = vunpack.c.l.b16 %v1242
    %v1342 = vunpack.c.h.b16 %v1242
    %v1343 = vunpack.c.l.b16 %v1243
    %v1344 = vunpack.c.h.b16 %v1243
    %v1345 = vunpack.c.l.b16 %v1244
    %v1346 = vunpack.c.h.b16 %v1244
    %v1347 = vunpack.c.l.b16 %v1245
    %v1348 = vunpack.c.h.b16 %v1245
    %v1349 = vunpack.c.l.b16 %v1246
    %v1350 = vunpack.c.h.b16 %v1246
    %v1351 = vunpack.c.l.b16 %v1247
    %v1352 = vunpack.c.h.b16 %v1247
    %v1353 = vunpack.c.l.b16 %v1248
    %v1354 = vunpack.c.h.b16 %v1248
    %v1355 = vunpack.c.l.b16 %v1249
    %v1356 = vunpack.c.h.b16 %v1249
    %v1357 = vunpack.c.l.b16 %v1250
    %v1358 = vunpack.c.h.b16 %v1250
    %v1359 = vpack.c.b16 %v1297, %v1295
    %v1360 = vpack.c.b16 %v1298, %v1296
    %v1361 = vpack.c.b16 %v1301, %v1299
    %v1362 = vpack.c.b16 %v1302, %v1300
    %v1363 = vpack.c.b16 %v1305, %v1303
    %v1364 = vpack.c.b16 %v1306, %v1304
    %v1365 = vpack.c.b16 %v1309, %v1307
    %v1366 = vpack.c.b16 %v1310, %v1308
    %v1367 = vpack.c.b16 %v1313, %v1311
    %v1368 = vpack.c.b16 %v1314, %v1312
    %v1369 = vpack.c.b16 %v1317, %v1315
    %v1370 = vpack.c.b16 %v1318, %v1316
    %v1371 = vpack.c.b16 %v1321, %v1319
    %v1372 = vpack.c.b16 %v1322, %v1320
    %v1373 = vpack.c.b16 %v1325, %v1323
    %v1374 = vpack.c.b16 %v1326, %v1324
    %v1375 = vpack.c.b16 %v1329, %v1327
    %v1376 = vpack.c.b16 %v1330, %v1328
    %v1377 = vpack.c.b16 %v1333, %v1331
    %v1378 = vpack.c.b16 %v1334, %v1332
    %v1379 = vpack.c.b16 %v1337, %v1335
    %v1380 = vpack.c.b16 %v1338, %v1336
    %v1381 = vpack.c.b16 %v1341, %v1339
    %v1382 = vpack.c.b16 %v1342, %v1340
    %v1383 = vpack.c.b16 %v1345, %v1343
    %v1384 = vpack.c.b16 %v1346, %v1344
    %v1385 = vpack.c.b16 %v1349, %v1347
    %v1386 = vpack.c.b16 %v1350, %v1348
    %v1387 = vpack.c.b16 %v1353, %v1351
    %v1388 = vpack.c.b16 %v1354, %v1352
    %v1389 = vpack.c.b16 %v1357, %v1355
    %v1390 = vpack.c.b16 %v1358, %v1356
    %1423 = vmatprep.subr.bf16.mxu0 %v1374
    %1424 = vmatpush1.bf16.msra.mxu0 %v1373
    %1425 = vmatprep.subr.bf16.mxu0 %v1372
    %1426 = vmatpush1.bf16.msra.mxu0 %v1371
    %1427 = vmatprep.subr.bf16.mxu0 %v1370
    %1428 = vmatpush1.bf16.msra.mxu0 %v1369
    %1429 = vmatprep.subr.bf16.mxu0 %v1368
    %1430 = vmatpush1.bf16.msra.mxu0 %v1367
    %1431 = vmatprep.subr.bf16.mxu0 %v1366
    %1432 = vmatpush1.bf16.msra.mxu0 %v1365
    %1433 = vmatprep.subr.bf16.mxu0 %v1364
    %1434 = vmatpush1.bf16.msra.mxu0 %v1363
    %1435 = vmatprep.subr.bf16.mxu0 %v1362
    %1436 = vmatpush1.bf16.msra.mxu0 %v1361
    %1437 = vmatprep.subr.bf16.mxu0 %v1360
    %1438 = vmatpush1.bf16.msra.mxu0 %v1359
    %1439 = vmatprep.subr.bf16.mxu0 %v1390
    %1440 = vmatpush2.bf16.msra.mxu0 %v1389
    %1441 = vmatprep.subr.bf16.mxu0 %v1388
    %1442 = vmatpush2.bf16.msra.mxu0 %v1387
    %1443 = vmatprep.subr.bf16.mxu0 %v1386
    %1444 = vmatpush2.bf16.msra.mxu0 %v1385
    %1445 = vmatprep.subr.bf16.mxu0 %v1384
    %1446 = vmatpush2.bf16.msra.mxu0 %v1383
    %1447 = vmatprep.subr.bf16.mxu0 %v1382
    %1448 = vmatpush2.bf16.msra.mxu0 %v1381
    %1449 = vmatprep.subr.bf16.mxu0 %v1380
    %1450 = vmatpush2.bf16.msra.mxu0 %v1379
    %1451 = vmatprep.subr.bf16.mxu0 %v1378
    %1452 = vmatpush2.bf16.msra.mxu0 %v1377
    %1453 = vmatprep.subr.bf16.mxu0 %v1376
    %1454 = vmatpush2.bf16.msra.mxu0 %v1375
    %1455 = vmatprep.mubr.bf16.mxu0 %v1218
    %1456 = vmatmul.mubr.bf16.gmra.mxu0 %v1217
    %v1457 = vpop.f32.mrf.mxu0
    %v1458 = vadd.f32 %v1256, %v1457
    %v1459 = vpop.f32.mrf.mxu0
    %v1460 = vadd.f32 %v1260, %v1459
    %v1461 = vpop.f32.mrf.mxu0
    %v1462 = vpop.f32.mrf.mxu0
    %1463 = vdwg.mxu0
    %v1464 = vlaneseq
    %v1465 = vand.u32 %v1464, 127
    %v1466 = vadd.s32 %v1465, 128
    %vm1467 = vcmp.lt.s32.totalorder %v1465, 58
    %vm1468 = vcmp.lt.s32.totalorder %v1466, 58
    %v1469 = vand.u32 2147483647, %v1458
    %v1470 = vand.u32 2147483647, %v1460
    %v1471 = vsel %vm1467, 1, 0
    %v1472 = vsel %vm1468, 1, 0
    %vm1473 = vcmp.eq.s32.totalorder %v1471, 1
    %vm1474 = vcmp.eq.s32.totalorder %v1472, 1
    %v1475 = vsel %vm1473, %v1469, %v1458
    %v1476 = vsel %vm1474, %v1470, %v1460
    %1477 = vst [vmem:[#allocation8] sm:$0xff] %v1475
    %vm1478 = vcmask 654336
    %1479 = vst.msk [vmem:[#allocation8 + $0x8] sm:$0xff] %vm1478, %v1476
    // Predicated region
    $region58: #{tpu_custom_call.1} parent=1 // pred_check
      _
    $region59: #{tpu_custom_call.1} parent=1 // pred_check_branch
      %1481 = sbr.rel (0) target = $region61
    $region60: #{tpu_custom_call.1} parent=1 // pred_region
      %s1483 = ssub.s32 256, 256
      %1484 = vsyncadd [#allocation4], %s1483
      %s1486 = sshll.u32 [#allocation8], 4
      %s1487 = int_to_ptr.vmem [resolvable:$true] %s1486
      %1489 = dma.vmem_to_hbm [thread:$0]  %s1487, 256, %s11, [#allocation4]
    $region61: #{tpu_custom_call.1} parent=1 // pred_fallthru
      _
    // Predicated region
    $region62: #{tpu_custom_call.1} parent=1 // pred_check
      _
    $region63: #{tpu_custom_call.1} parent=1 // pred_check_branch
      %1491 = sbr.rel (0) target = $region65
    $region64: #{tpu_custom_call.1} parent=1 // pred_region
      %1492 = dma.done [#allocation4], 256
    $region65: #{tpu_custom_call.1} parent=1 // pred_fallthru
      _
    %1493 = vsyncpa [#allocation3], 1
    %1494 = vsyncpa [#allocation6], 1
    %1495 = vsyncpa [#allocation4], 1

</llo_original>
